<compile_context>
chip_gen: v7x
topology: tpu7x:2x2x1
jax: 0.10.0
libtpu: 0.0.40
codegen_flags: <defaults>
</compile_context>

<pallas_src>
import math
from functools import partial

import jax
import jax.numpy as jnp
from jax.experimental import pallas as pl
from jax.experimental.pallas import tpu as pltpu


# ----------------------------------------------------------------------------
# Standalone LayerNormalization kernel (exactly the spec module's forward)
# ----------------------------------------------------------------------------
def _layer_norm_kernel(a_ref, g_ref, b_ref, o_ref, *, eps, d_h):
    a = a_ref[...]                                            # (TILE_R, d_h) f32
    mu = jnp.mean(a, axis=-1, keepdims=True)
    # torch.std default is unbiased (divide by N-1); eps added to sigma.
    var = jnp.sum((a - mu) ** 2, axis=-1, keepdims=True) * (1.0 / (d_h - 1))
    sigma = jnp.sqrt(var)
    inv = pl.reciprocal(sigma + eps, approx=True)             # EUP vrcp (free slot)
    o_ref[...] = ((a - mu) * inv * g_ref[...] + b_ref[...]).astype(o_ref.dtype)


def layer_normalization(a, g, b, eps=1e-3, tile_rows=512):
    """Pallas equivalent of LayerNormalization.forward(a) for 3-D `a`."""
    if a.shape[1] == 1:            # spec: `if a.size(1) == 1: return a`
        return a                   # (static, trace-time branch)
    B, L, d_h = a.shape
    rows = B * L
    a2 = a.reshape(rows, d_h)

    # Big row tiles: amortize per-grid-step overhead on this mem-bound op.
    tr = min(tile_rows, rows)
    if tr != rows:                 # (8,128) rule: sublane dim multiple of 8
        tr = max(8, (tr // 8) * 8)
    grid = (pl.cdiv(rows, tr),)    # partial last block is masked by Pallas

    out = pl.pallas_call(
        partial(_layer_norm_kernel, eps=eps, d_h=d_h),
        out_shape=jax.ShapeDtypeStruct((rows, d_h), a.dtype),
        grid=grid,
        in_specs=[
            pl.BlockSpec((tr, d_h), lambda i: (i, 0)),
            pl.BlockSpec((1, d_h), lambda i: (0, 0)),
            pl.BlockSpec((1, d_h), lambda i: (0, 0)),
        ],
        out_specs=pl.BlockSpec((tr, d_h), lambda i: (i, 0)),
        compiler_params=pltpu.CompilerParams(
            dimension_semantics=("parallel",),
            vmem_limit_bytes=32 * 1024 * 1024,
        ),
    )(a2, g.reshape(1, d_h), b.reshape(1, d_h))
    return out.reshape(B, L, d_h)


# ----------------------------------------------------------------------------
# Fused MultiHeadAttention kernel: QKV proj + attention + out-proj + LN
# ----------------------------------------------------------------------------
def _fused_mha_kernel(q_ref, k_ref, wq_ref, wk_ref, wv_ref,
                      lin_w_ref, lin_b_ref, g_ref, beta_ref,
                      *out_and_scratch,
                      tb, len_q, len_k, n_h, d_k, d_v, d_m,
                      inv_temper, eps, apply_norm, with_attn):
    if with_attn:
        out_ref, attn_ref, ho_ref = out_and_scratch
    else:
        out_ref, ho_ref = out_and_scratch
        attn_ref = None

    # Flattened activations: residual stays f32, matmul operands go bf16.
    q_f32 = q_ref[...].reshape(tb * len_q, d_m)               # (TB*L_q, d_m)
    q_bf = q_f32.astype(jnp.bfloat16)
    k_bf = k_ref[...].reshape(tb * len_k, d_m).astype(jnp.bfloat16)

    # All-head projections as single lane-dense bf16 matmuls (f32 accumulate).
    qs_all = jnp.dot(q_bf, wq_ref[...], preferred_element_type=jnp.float32)
    ks_all = jnp.dot(k_bf, wk_ref[...], preferred_element_type=jnp.float32)
    # NOTE: reference builds the value projection from `k` (not `v`).
    vs_all = jnp.dot(k_bf, wv_ref[...], preferred_element_type=jnp.float32)

    # Per-batch-row, per-head attention.  Results are written incrementally
    # into refs (attn slab + VMEM head-output scratch) so only one head's
    # scores/outputs are ever live -> bounded vreg pressure, no concatenates.
    for bi in range(tb):                                      # static unroll
        q0, q1 = bi * len_q, (bi + 1) * len_q
        k0, k1 = bi * len_k, (bi + 1) * len_k
        for h in range(n_h):                                  # static unroll
            qs = qs_all[q0:q1, h * d_k:(h + 1) * d_k].astype(jnp.bfloat16)
            ks = ks_all[k0:k1, h * d_k:(h + 1) * d_k].astype(jnp.bfloat16)
            vs = vs_all[k0:k1, h * d_v:(h + 1) * d_v].astype(jnp.bfloat16)

            scores = jnp.dot(qs, ks.T,
                             preferred_element_type=jnp.float32) * inv_temper
            m = jnp.max(scores, axis=-1, keepdims=True)
            e = jnp.exp(scores - m)                           # f32 softmax math
            attn = e * pl.reciprocal(jnp.sum(e, axis=-1, keepdims=True),
                                     approx=True)
            # TODO(synk): attention dropout omitted (eval-mode identity).

            if attn_ref is not None:
                attn_ref[bi, :, h * len_k:(h + 1) * len_k] = (
                    attn.astype(attn_ref.dtype))

            ho_ref[q0:q1, h * d_v:(h + 1) * d_v] = jnp.dot(
                attn.astype(jnp.bfloat16), vs,
                preferred_element_type=jnp.float32)

    # Output linear + residual (+ dropout identity) + LayerNormalization,
    # done once on the whole (TB*L_q, n_h*d_v) slab.
    ho = ho_ref[...].astype(jnp.bfloat16)
    y = jnp.dot(ho, lin_w_ref[...],
                preferred_element_type=jnp.float32) + lin_b_ref[...]
    # TODO(synk): output dropout omitted (eval-mode identity).
    y = y + q_f32                                             # residual = q

    if apply_norm:                             # skipped when len_q == 1 (spec)
        mu = jnp.mean(y, axis=-1, keepdims=True)
        var = jnp.sum((y - mu) ** 2, axis=-1, keepdims=True) * (1.0 / (d_m - 1))
        sigma = jnp.sqrt(var)                  # unbiased std, eps added to sigma
        y = ((y - mu) * pl.reciprocal(sigma + eps, approx=True)
             * g_ref[...] + beta_ref[...])

    out_ref[...] = y.reshape(tb, len_q, d_m).astype(out_ref.dtype)


def multi_head_attention(q, k, v, params, *, n_h, d_k, d_v, eps=1e-3,
                         tb=None, return_attn=True):
    del v  # the reference forward never uses `v` (vs comes from k) — reproduced.
    b, len_q, d_m = q.shape
    _, len_k, _ = k.shape
    inv_temper = 1.0 / math.sqrt(d_m)   # ScaledDotProductAttention built with d_m

    # Batch rows per grid step: big enough to feed the MXU a decent M, but keep
    # >=2 parallel grid steps so v7x's second TensorCore has work.
    if tb is None:
        tb = max(1, min(b, 256 // max(1, len_q)))
        if b >= 2:
            tb = min(tb, max(1, b // 2))
    while b % tb:
        tb -= 1

    # Fuse per-head weights into lane-dense (d_m, n_h*d_k/d_v) matrices so the
    # column block [h*d_k:(h+1)*d_k] equals W[h]; ship them as bf16 (halves the
    # HBM->VMEM bytes and VMEM footprint, runs the MXU at native bf16 rate).
    W_q = (jnp.transpose(params["W_q"], (1, 0, 2))
           .reshape(d_m, n_h * d_k).astype(jnp.bfloat16))
    W_k = (jnp.transpose(params["W_k"], (1, 0, 2))
           .reshape(d_m, n_h * d_k).astype(jnp.bfloat16))
    W_v = (jnp.transpose(params["W_v"], (1, 0, 2))
           .reshape(d_m, n_h * d_v).astype(jnp.bfloat16))
    lin_w = params["lin_w"].astype(jnp.bfloat16)              # (n_h*d_v, d_m)
    lin_b = params["lin_b"].reshape(1, d_m)                   # f32
    g = params["g"].reshape(1, d_m)
    beta = params["b"].reshape(1, d_m)

    out_shapes = [jax.ShapeDtypeStruct((b, len_q, d_m), jnp.float32)]
    out_specs = [pl.BlockSpec((tb, len_q, d_m), lambda i: (i, 0, 0))]
    if return_attn:
        out_shapes.append(
            jax.ShapeDtypeStruct((b, len_q, n_h * len_k), jnp.float32))
        out_specs.append(
            pl.BlockSpec((tb, len_q, n_h * len_k), lambda i: (i, 0, 0)))

    results = pl.pallas_call(
        partial(_fused_mha_kernel, tb=tb, len_q=len_q, len_k=len_k,
                n_h=n_h, d_k=d_k, d_v=d_v, d_m=d_m,
                inv_temper=inv_temper, eps=eps,
                apply_norm=(len_q != 1), with_attn=return_attn),
        out_shape=tuple(out_shapes),
        grid=(b // tb,),
        in_specs=[
            pl.BlockSpec((tb, len_q, d_m), lambda i: (i, 0, 0)),   # q (+residual)
            pl.BlockSpec((tb, len_k, d_m), lambda i: (i, 0, 0)),   # k
            pl.BlockSpec((d_m, n_h * d_k), lambda i: (0, 0)),      # fused W_q (bf16)
            pl.BlockSpec((d_m, n_h * d_k), lambda i: (0, 0)),      # fused W_k (bf16)
            pl.BlockSpec((d_m, n_h * d_v), lambda i: (0, 0)),      # fused W_v (bf16)
            pl.BlockSpec((n_h * d_v, d_m), lambda i: (0, 0)),      # out-proj W (bf16)
            pl.BlockSpec((1, d_m), lambda i: (0, 0)),              # out-proj b
            pl.BlockSpec((1, d_m), lambda i: (0, 0)),              # LN gamma
            pl.BlockSpec((1, d_m), lambda i: (0, 0)),              # LN beta
        ],
        out_specs=tuple(out_specs),
        scratch_shapes=[pltpu.VMEM((tb * len_q, n_h * d_v), jnp.float32)],
        compiler_params=pltpu.CompilerParams(
            dimension_semantics=("parallel",),
            # Explicit budget so the same config fits v7x's 64 MiB VMEM.
            vmem_limit_bytes=32 * 1024 * 1024,
        ),
    )(q, k, W_q, W_k, W_v, lin_w, lin_b, g, beta)

    if return_attn:
        out, attn_slab = results
        # Rearrange lane-dense slab to torch-parity (n_h*b, L_q, L_k) outside.
        attn = (attn_slab.reshape(b, len_q, n_h, len_k)
                .transpose(2, 0, 1, 3)
                .reshape(n_h * b, len_q, len_k))
        return out, attn
    out = results[0] if isinstance(results, (tuple, list)) else results
    return out, None


def init_params(key, n_h, d_m, d_k, d_v):
    """Deterministic synthetic init mimicking xavier_normal shapes."""
    k1, k2, k3, k4 = jax.random.split(key, 4)

    def xavier_normal(kk, shape, fan_in, fan_out):
        std = math.sqrt(2.0 / (fan_in + fan_out))
        return std * jax.random.normal(kk, shape, dtype=jnp.float32)

    return {
        "W_q": xavier_normal(k1, (n_h, d_m, d_k), d_m, d_k),
        "W_k": xavier_normal(k2, (n_h, d_m, d_k), d_m, d_k),
        "W_v": xavier_normal(k3, (n_h, d_m, d_v), d_m, d_v),
        # nn.Linear(n_h*d_v, d_m): stored pre-transposed as (in, out)
        "lin_w": xavier_normal(k4, (n_h * d_v, d_m), n_h * d_v, d_m),
        "lin_b": jnp.zeros((d_m,), jnp.float32),
        # LayerNormalization params
        "g": jnp.ones((d_m,), jnp.float32),
        "b": jnp.zeros((d_m,), jnp.float32),
    }


if __name__ == "__main__":
    B, LEN_Q, LEN_K = 2, 8, 8
    N_H, D_M, D_K, D_V = 4, 32, 8, 8

    key = jax.random.PRNGKey(0)
    kq, kk, kv, kp, ka = jax.random.split(key, 5)
    q = jax.random.normal(kq, (B, LEN_Q, D_M), dtype=jnp.float32)
    k = jax.random.normal(kk, (B, LEN_K, D_M), dtype=jnp.float32)
    v = jax.random.normal(kv, (B, LEN_K, D_M), dtype=jnp.float32)

    params = init_params(kp, N_H, D_M, D_K, D_V)

    # Standalone LayerNormalization kernel (the spec module itself).
    a = jax.random.normal(ka, (B, LEN_Q, D_M), dtype=jnp.float32)
    ln_out = layer_normalization(a, params["g"], params["b"], eps=1e-3)

    # Pure-JAX reference for the LayerNorm (loose tol: approx reciprocal).
    mu_r = jnp.mean(a, axis=-1, keepdims=True)
    sig_r = jnp.sqrt(jnp.sum((a - mu_r) ** 2, axis=-1, keepdims=True) / (D_M - 1))
    ln_ref = (a - mu_r) / (sig_r + 1e-3) * params["g"] + params["b"]

    # Fused MHA (QKV proj + attention + out-proj + residual + LayerNorm).
    out, attn = multi_head_attention(q, k, v, params,
                                     n_h=N_H, d_k=D_K, d_v=D_V, eps=1e-3,
                                     return_attn=True)

    jax.block_until_ready((ln_out, out, attn))

    assert ln_out.shape == (B, LEN_Q, D_M)
    assert jnp.max(jnp.abs(ln_out - ln_ref)) < 2e-2
    assert out.shape == (B, LEN_Q, D_M)
    assert attn.shape == (N_H * B, LEN_Q, LEN_K)
    print("KERNEL_OK")
</pallas_src>

<mosaic_0001>
module attributes {stable_mosaic.version = 11 : i64} {
  func.func @_layer_norm_kernel(%arg0: i32, %arg1: memref<16x32xf32, #tpu.memory_space<vmem>>, %arg2: memref<1x32xf32, #tpu.memory_space<vmem>>, %arg3: memref<1x32xf32, #tpu.memory_space<vmem>>, %arg4: memref<16x32xf32, #tpu.memory_space<vmem>>) attributes {dimension_semantics = [#tpu.dimension_semantics<parallel>], iteration_bounds = array<i64: 1>, scalar_prefetch = 0 : i64, scratch_operands = 0 : i64, tpu.core_type = #tpu.core_type<tc>, window_params = [{transform_indices = @transform_0, window_bounds = array<i64: 16, 32>}, {pipeline_mode = #tpu.pipeline_mode<synchronous>, transform_indices = @transform_1, window_bounds = array<i64: 1, 32>}, {pipeline_mode = #tpu.pipeline_mode<synchronous>, transform_indices = @transform_2, window_bounds = array<i64: 1, 32>}, {transform_indices = @transform_3, window_bounds = array<i64: 16, 32>}]} {
    %c0 = arith.constant 0 : index
    %c0_0 = arith.constant 0 : index
    %0 = vector.load %arg1[%c0, %c0_0] : memref<16x32xf32, #tpu.memory_space<vmem>>, vector<16x32xf32>
    %cst = arith.constant dense<0.000000e+00> : vector<16xf32>
    %1 = vector.multi_reduction <add>, %0, %cst [1] : vector<16x32xf32> to vector<16xf32>
    %2 = vector.shape_cast %1 : vector<16xf32> to vector<16x1xf32>
    %cst_1 = arith.constant 3.200000e+01 : f32
    %3 = vector.broadcast %cst_1 : f32 to vector<16x1xf32>
    %4 = arith.divf %2, %3 : vector<16x1xf32>
    %5 = vector.broadcast %4 : vector<16x1xf32> to vector<16x32xf32>
    %6 = arith.subf %0, %5 : vector<16x32xf32>
    %7 = arith.mulf %6, %6 : vector<16x32xf32>
    %cst_2 = arith.constant dense<0.000000e+00> : vector<16xf32>
    %8 = vector.multi_reduction <add>, %7, %cst_2 [1] : vector<16x32xf32> to vector<16xf32>
    %9 = vector.shape_cast %8 : vector<16xf32> to vector<16x1xf32>
    %cst_3 = arith.constant 0.0322580636 : f32
    %10 = vector.broadcast %cst_3 : f32 to vector<16x1xf32>
    %11 = arith.mulf %9, %10 : vector<16x1xf32>
    %12 = math.sqrt %11 : vector<16x1xf32>
    %cst_4 = arith.constant 1.000000e-03 : f32
    %13 = vector.broadcast %cst_4 : f32 to vector<16x1xf32>
    %14 = arith.addf %12, %13 : vector<16x1xf32>
    %15 = tpu.reciprocal %14 {approx = true} : vector<16x1xf32> -> vector<16x1xf32>
    %16 = vector.broadcast %4 : vector<16x1xf32> to vector<16x32xf32>
    %17 = arith.subf %0, %16 : vector<16x32xf32>
    %18 = vector.broadcast %15 : vector<16x1xf32> to vector<16x32xf32>
    %19 = arith.mulf %17, %18 : vector<16x32xf32>
    %c0_5 = arith.constant 0 : index
    %c0_6 = arith.constant 0 : index
    %20 = vector.load %arg2[%c0_5, %c0_6] : memref<1x32xf32, #tpu.memory_space<vmem>>, vector<1x32xf32>
    %21 = vector.broadcast %20 : vector<1x32xf32> to vector<16x32xf32>
    %22 = arith.mulf %19, %21 : vector<16x32xf32>
    %c0_7 = arith.constant 0 : index
    %c0_8 = arith.constant 0 : index
    %23 = vector.load %arg3[%c0_7, %c0_8] : memref<1x32xf32, #tpu.memory_space<vmem>>, vector<1x32xf32>
    %24 = vector.broadcast %23 : vector<1x32xf32> to vector<16x32xf32>
    %25 = arith.addf %22, %24 : vector<16x32xf32>
    %c0_9 = arith.constant 0 : index
    %c0_10 = arith.constant 0 : index
    %26 = vector.load %arg4[%c0_9, %c0_10] : memref<16x32xf32, #tpu.memory_space<vmem>>, vector<16x32xf32>
    tpu.vector_store %arg4[%c0_9, %c0_10], %25 {strides = array<i32>} : memref<16x32xf32, #tpu.memory_space<vmem>>, vector<16x32xf32>,
    return
  }
  func.func @transform_0(%arg0: i32) -> (i32, i32) {
    %c0_i32 = arith.constant 0 : i32
    %c0_i32_0 = arith.constant 0 : i32
    return %arg0, %c0_i32 : i32, i32
  }
  func.func @transform_1(%arg0: i32) -> (i32, i32) {
    %c0_i32 = arith.constant 0 : i32
    %c0_i32_0 = arith.constant 0 : i32
    %c0_i32_1 = arith.constant 0 : i32
    return %c0_i32, %c0_i32_0 : i32, i32
  }
  func.func @transform_2(%arg0: i32) -> (i32, i32) {
    %c0_i32 = arith.constant 0 : i32
    %c0_i32_0 = arith.constant 0 : i32
    %c0_i32_1 = arith.constant 0 : i32
    return %c0_i32, %c0_i32_0 : i32, i32
  }
  func.func @transform_3(%arg0: i32) -> (i32, i32) {
    %c0_i32 = arith.constant 0 : i32
    %c0_i32_0 = arith.constant 0 : i32
    return %arg0, %c0_i32 : i32, i32
  }
}

</mosaic_0001>

<llo_original>
// kernel: tpu_custom_call.1
$region0: #{tpu_custom_call.1}
  #allocation0 [shape = 'u32[]', space=smem, size = 0x4, offset = 0x4, fixed_abs, tag = 'smem constant byte address 0x4 - core index']
  #allocation1 [shape = 'u32[144,128]{1,0:T(1,128)}', space=vmem, size = 0x12000, scoped, tag = 'internal scratch']
  %s0 = inlined_call_operand.hbm [shape: f32[16,32], index: 0, kind: input, shape index: {}]
  %s1 = inlined_call_operand.vmem [shape: f32[1,32], index: 1, kind: input, shape index: {}]
  %s2 = inlined_call_operand.vmem [shape: f32[1,32], index: 2, kind: input, shape index: {}]
  %s3 = inlined_call_operand.hbm [shape: f32[16,32], index: 3, kind: output, shape index: {}]
  %s4 = sld [smem:[#allocation0]]
  $region26: #{tpu_custom_call.1} parent=0
    _
  %s6 = ssub.s32 1, %s4
  %s7 = scalar_select 0, %s6, %s4
  $region1: #{tpu_custom_call.1} parent=0
    #allocation2 [shape = 'u8[8192]{0}', space=vmem, size = 0x2000, scoped, tag = 'input window, operand 0, single buffered']
    #allocation3 [shape = 's32[1]{0}', space=sflag, size = 0x4, scoped, tag = 'scoped memory for tpu_custom_call.1']
    #allocation4 [shape = 's32[1]{0}', space=sflag, size = 0x4, scoped, tag = 'scoped memory for tpu_custom_call.1']
    #allocation5 [shape = 'u8[8192]{0}', space=vmem, size = 0x2000, scoped, tag = 'output window, operand 0, single buffered']
    %8 = vsyncpa [#allocation3], 0
    %9 = vsyncpa [#allocation4], 0
    // Predicated region
    $region2: #{tpu_custom_call.1} parent=1 // pred_check
      _
    $region3: #{tpu_custom_call.1} parent=1 // pred_check_branch
      %11 = sbr.rel (0) target = $region5
    $region4: #{tpu_custom_call.1} parent=1 // pred_region
      %s13 = ssub.s32 256, 256
      %14 = vsyncadd [#allocation3], %s13
      %s15 = sshll.u32 [#allocation2], 4
      %s16 = int_to_ptr.vmem [resolvable:$true] %s15
      %21 = dma.hbm_to_vmem [thread:$0]  %s0, 256, %s16, [#allocation3], 128, 128, 8
    $region5: #{tpu_custom_call.1} parent=1 // pred_fallthru
      _
    // Predicated region
    $region6: #{tpu_custom_call.1} parent=1 // pred_check
      _
    $region7: #{tpu_custom_call.1} parent=1 // pred_check_branch
      %23 = sbr.rel (0) target = $region9
    $region8: #{tpu_custom_call.1} parent=1 // pred_region
      _
    $region9: #{tpu_custom_call.1} parent=1 // pred_fallthru
      _
    // Predicated region
    $region10: #{tpu_custom_call.1} parent=1 // pred_check
      _
    $region11: #{tpu_custom_call.1} parent=1 // pred_check_branch
      %25 = sbr.rel (0) target = $region13
    $region12: #{tpu_custom_call.1} parent=1 // pred_region
      _
    $region13: #{tpu_custom_call.1} parent=1 // pred_fallthru
      _
    // Predicated region
    $region14: #{tpu_custom_call.1} parent=1 // pred_check
      _
    $region15: #{tpu_custom_call.1} parent=1 // pred_check_branch
      %27 = sbr.rel (0) target = $region17
    $region16: #{tpu_custom_call.1} parent=1 // pred_region
      %28 = dma.done [#allocation3], 256
    $region17: #{tpu_custom_call.1} parent=1 // pred_fallthru
      _
    %v29 = vld [vmem:[#allocation2] sm:$0xff]
    %v30 = vld [vmem:[#allocation2 + $0x8] sm:$0xff]
    %vm31 = vcmask 261120
    %v32 = vsel %vm31, %v29, 0.0
    %33 = vadd.xlane.f32.xlu0 %v32
    %v34 = vpop.xlane.xlu0 %33
    %v35 = vsel %vm31, %v30, 0.0
    %36 = vadd.xlane.f32.xlu0 %v35
    %v37 = vpop.xlane.xlu0 %36
    %v38 = vrcp.pop 32.0
    %v39 = vmul.f32 %v34, %v38
    %v40 = vmul.f32 %v37, %v38
    %v41 = vsub.f32 %v29, %v39
    %v42 = vsub.f32 %v30, %v40
    %v43 = vmul.f32 %v41, %v41
    %v44 = vmul.f32 %v42, %v42
    %v45 = vsel %vm31, %v43, 0.0
    %46 = vadd.xlane.f32.xlu0 %v45
    %v47 = vpop.xlane.xlu0 %46
    %v48 = vsel %vm31, %v44, 0.0
    %49 = vadd.xlane.f32.xlu0 %v48
    %v50 = vpop.xlane.xlu0 %49
    %v51 = vmul.f32 %v47, 0.032258064
    %v52 = vmul.f32 %v50, 0.032258064
    %v53 = vrsqrt.pop %v51
    %v54 = vmul.f32 %v51, %v53
    %vm55 = vcmp.eq.f32.partialorder %v51, inf
    %v56 = vsel %vm55, %v51, %v54
    %vm57 = vcmp.eq.f32.partialorder %v51, 0.0
    %v58 = vand.u32 %v51, 2147483648
    %v59 = vsel %vm57, %v58, %v56
    %v60 = vrsqrt.pop %v52
    %v61 = vmul.f32 %v52, %v60
    %vm62 = vcmp.eq.f32.partialorder %v52, inf
    %v63 = vsel %vm62, %v52, %v61
    %vm64 = vcmp.eq.f32.partialorder %v52, 0.0
    %v65 = vand.u32 %v52, 2147483648
    %v66 = vsel %vm64, %v65, %v63
    %v67 = vadd.f32 %v59, 0.001
    %v68 = vadd.f32 %v66, 0.001
    %v69 = vrcp.pop %v67
    %v70 = vrcp.pop %v68
    %v71 = vmul.f32 %v41, %v69
    %v72 = vmul.f32 %v42, %v70
    %v73 = vld [vmem:[%s1] sm:$0x1]
    %v75 = vlaneseq
    %v76 = vshrl.u32 %v75, 7
    %v77 = vsub.s32 0, %v76
    %v78 = vrot.slane %v73, %v77
    %v80 = vmul.f32 %v71, %v78
    %v81 = vmul.f32 %v72, %v78
    %v82 = vld [vmem:[%s2] sm:$0x1]
    %v84 = vlaneseq
    %v85 = vshrl.u32 %v84, 7
    %v86 = vsub.s32 0, %v85
    %v87 = vrot.slane %v82, %v86
    %v89 = vadd.f32 %v80, %v87
    %v90 = vadd.f32 %v81, %v87
    %91 = vst.msk [vmem:[#allocation5] sm:$0xff] %vm31, %v89
    %92 = vst.msk [vmem:[#allocation5 + $0x8] sm:$0xff] %vm31, %v90
    // Predicated region
    $region18: #{tpu_custom_call.1} parent=1 // pred_check
      _
    $region19: #{tpu_custom_call.1} parent=1 // pred_check_branch
      %94 = sbr.rel (0) target = $region21
    $region20: #{tpu_custom_call.1} parent=1 // pred_region
      %s96 = ssub.s32 256, 256
      %97 = vsyncadd [#allocation4], %s96
      %s98 = sshll.u32 [#allocation5], 4
      %s99 = int_to_ptr.vmem [resolvable:$true] %s98
      %104 = dma.vmem_to_hbm [thread:$0]  %s99, 256, %s3, [#allocation4], 128, 128, 8
    $region21: #{tpu_custom_call.1} parent=1 // pred_fallthru
      _
    // Predicated region
    $region22: #{tpu_custom_call.1} parent=1 // pred_check
      _
    $region23: #{tpu_custom_call.1} parent=1 // pred_check_branch
      %106 = sbr.rel (0) target = $region25
    $region24: #{tpu_custom_call.1} parent=1 // pred_region
      %107 = dma.done [#allocation4], 256
    $region25: #{tpu_custom_call.1} parent=1 // pred_fallthru
      _
    %108 = vsyncpa [#allocation3], 1
    %109 = vsyncpa [#allocation4], 1

</llo_original>
